<compile_context>
chip_gen: v7x
topology: tpu7x:2x2x1
jax: 0.10.0
libtpu: 0.0.40
codegen_flags: <defaults>
</compile_context>

<pallas_src>
import math

import jax
import jax.numpy as jnp
from jax.experimental import pallas as pl
from jax.experimental.pallas import tpu as pltpu

_MIB = 1 << 20
_VMEM_CAP_BYTES = 40 * _MIB  # stay well under v7x's 64 MiB physical VMEM


def make_sinusoidal_pe(max_len: int, d_model: int, dtype=jnp.float32):
    """Buffer setup identical to the PyTorch __init__ (plain JAX glue).

    Guarded for odd d_model (the PyTorch reference would shape-mismatch)."""
    position = jnp.arange(0, max_len, dtype=jnp.float32)[:, None]            # (max_len, 1)
    div_term = jnp.exp(
        jnp.arange(0, d_model, 2, dtype=jnp.float32) * (-math.log(10000.0) / d_model)
    )                                                                         # (ceil(d/2),)
    angles = position * div_term                                              # (max_len, ceil(d/2))
    pe = jnp.zeros((max_len, d_model), dtype=jnp.float32)
    pe = pe.at[:, 0::2].set(jnp.sin(angles))
    pe = pe.at[:, 1::2].set(jnp.cos(angles[:, : d_model // 2]))
    # unsqueeze(0).transpose(0, 1) -> (max_len, 1, d_model)
    return pe[:, None, :].astype(dtype)


def _round_up(a: int, b: int) -> int:
    return ((a + b - 1) // b) * b


def _block_budget_bytes() -> int:
    """Per-block byte budget for the x/out blocks, tiered by TPU generation."""
    try:
        kind = jax.devices()[0].device_kind.lower()
    except Exception:
        kind = ""
    if "v5 lite" in kind or "v5e" in kind or "v5lite" in kind:
        return 2 * _MIB   # ~0.82 TB/s HBM: 2 MiB already keeps per-step overhead <10%
    if "v6" in kind:
        return 4 * _MIB   # measured ~85% of HBM roofline at 1-4 MiB blocks
    if "v7" in kind:
        return 6 * _MIB   # 3.2 TB/s HBM: bigger blocks amortize ~0.35us/step cost
    return 4 * _MIB


def _choose_tile_s(S: int, row_bytes: int, budget: int) -> int:
    tile_s = max(8, (budget // max(row_bytes, 1)) // 8 * 8)
    # Give the DMA pipeline (and v7x's two TensorCores) at least ~4 grid steps
    # whenever the sequence axis is long enough.
    if S >= 32:
        tile_s = min(tile_s, _round_up(pl.cdiv(S, 4), 8))
    return int(min(tile_s, _round_up(S, 8)))


def _fit_vmem(tile_s: int, x_row_bytes: int, pe_row_bytes: int):
    """Shrink tile_s until the double-buffered working set fits; return
    (tile_s, vmem_limit_bytes)."""
    def need(ts):
        # 2 buffers each for x, out and pe, plus slack.
        return 2 * (2 * ts * x_row_bytes + ts * pe_row_bytes) + 2 * _MIB

    while tile_s > 8 and need(tile_s) > _VMEM_CAP_BYTES:
        tile_s = max(8, (tile_s // 2) // 8 * 8)
    return tile_s, int(min(max(need(tile_s), 16 * _MIB), _VMEM_CAP_BYTES))


def positional_encoding(x: jax.Array, pe: jax.Array, *, force_pallas: bool = False,
                        donate_x: bool = False,
                        min_pallas_bytes: int = 4 * _MIB) -> jax.Array:
    """x: (S, B, D), pe: (max_len, 1, D). Returns x + pe[:S] (broadcast over B)."""
    S, B, D = x.shape
    max_len = pe.shape[0]
    assert max_len >= S, "sequence length exceeds max_position_embeddings"

    itemsize = jnp.dtype(x.dtype).itemsize
    pe2 = pe.reshape(max_len, D).astype(x.dtype)   # 2-D -> sublane-dense pe blocks

    lane_dense = (D % 128 == 0)
    # Zero arithmetic intensity: prefer letting XLA fuse this add into the
    # producer/consumer.  Use the standalone kernel only for large, lane-dense
    # activations (or when explicitly forced).
    if not force_pallas and (x.size * itemsize < min_pallas_bytes or not lane_dense):
        return x + pe2[:S][:, None, :]

    budget = _block_budget_bytes()
    aliases = {0: 0} if donate_x else {}

    # --- Small-batch merged layout: x viewed as (S, B*D) (free reshape) so both
    # minor block dims are dense; pe broadcast across batch via lane-aligned concat.
    use_merged = lane_dense and B < 8 and (8 * B * D * itemsize) <= budget

    if use_merged:
        x2 = x.reshape(S, B * D)
        x_row = B * D * itemsize
        pe_row = D * itemsize
        tile_s = _choose_tile_s(S, x_row, budget)
        tile_s, vmem_limit = _fit_vmem(tile_s, x_row, pe_row)
        grid = (pl.cdiv(S, tile_s),)

        def merged_kernel(x_ref, pe_ref, o_ref):
            pe_blk = pe_ref[...]                       # (tile_s, D)
            if B > 1:
                # D % 128 == 0 -> tile-aligned lane concat (cheap, on-chip only).
                pe_blk = jnp.concatenate([pe_blk] * B, axis=-1)
            o_ref[...] = (x_ref[...] + pe_blk).astype(o_ref.dtype)

        out2 = pl.pallas_call(
            merged_kernel,
            out_shape=jax.ShapeDtypeStruct((S, B * D), x.dtype),
            grid_spec=pltpu.PrefetchScalarGridSpec(
                num_scalar_prefetch=0,
                grid=grid,
                in_specs=[
                    pl.BlockSpec((tile_s, B * D), lambda i: (i, 0)),
                    pl.BlockSpec((tile_s, D), lambda i: (i, 0)),
                ],
                out_specs=pl.BlockSpec((tile_s, B * D), lambda i: (i, 0)),
            ),
            compiler_params=pltpu.CompilerParams(
                dimension_semantics=("parallel",),
                vmem_limit_bytes=vmem_limit,
            ),
            input_output_aliases=aliases,
        )(x2, pe2)
        return out2.reshape(S, B, D)

    # --- General 3-D layout: blocks (tile_s, B, tile_d); tile D in multiples of
    # 128 when a single sequence row would blow the per-block budget.
    if lane_dense:
        tile_d = int(min(D, max(128, (budget // (8 * B * itemsize)) // 128 * 128)))
    else:
        tile_d = D  # forced path on small/odd D: correct, just masked stores
    x_row = B * tile_d * itemsize
    pe_row = tile_d * itemsize
    tile_s = _choose_tile_s(S, x_row, budget)
    tile_s, vmem_limit = _fit_vmem(tile_s, x_row, pe_row)
    grid = (pl.cdiv(S, tile_s), pl.cdiv(D, tile_d))

    def kernel(x_ref, pe_ref, o_ref):
        # pe block is (tile_s, tile_d); broadcast over the batch (sublane) axis.
        o_ref[...] = (x_ref[...] + pe_ref[...][:, None, :]).astype(o_ref.dtype)

    return pl.pallas_call(
        kernel,
        out_shape=jax.ShapeDtypeStruct((S, B, D), x.dtype),
        grid_spec=pltpu.PrefetchScalarGridSpec(
            num_scalar_prefetch=0,
            grid=grid,
            in_specs=[
                pl.BlockSpec((tile_s, B, tile_d), lambda i, j: (i, 0, j)),
                pl.BlockSpec((tile_s, tile_d), lambda i, j: (i, j)),
            ],
            out_specs=pl.BlockSpec((tile_s, B, tile_d), lambda i, j: (i, 0, j)),
        ),
        compiler_params=pltpu.CompilerParams(
            dimension_semantics=("parallel", "parallel"),
            vmem_limit_bytes=vmem_limit,
        ),
        input_output_aliases=aliases,
    )(x, pe2)


if __name__ == "__main__":
    key = jax.random.PRNGKey(0)

    # (tag, seq_len, batch, d_model, max_len, force_pallas)
    cases = [
        ("toy-3d-forced", 8, 2, 32, 16, True),     # module's toy config, 3-D path
        ("merged-dense", 16, 2, 128, 32, True),    # small batch -> (S, B*D) merged path
        ("batch8-dense", 16, 8, 128, 32, True),    # 3-D path with dense sublanes
        ("xla-fallback", 8, 2, 32, 16, False),     # tiny / small-D -> plain XLA add
    ]
    for idx, (tag, seq_len, batch, d_model, max_len, force) in enumerate(cases):
        k = jax.random.fold_in(key, idx)
        x = jax.random.normal(k, (seq_len, batch, d_model), dtype=jnp.float32)
        pe = make_sinusoidal_pe(max_len, d_model, dtype=x.dtype)

        out = jax.block_until_ready(positional_encoding(x, pe, force_pallas=force))

        ref = x + pe[:seq_len]  # plain-JAX reference (same broadcast as PyTorch)
        assert out.shape == x.shape, f"{tag}: bad shape {out.shape}"
        # f32 inputs -> tight tolerance; use a looser tolerance for bf16 runs.
        assert jnp.allclose(out, ref, atol=1e-6), f"{tag}: mismatch vs reference"

    print("KERNEL_OK")
</pallas_src>

<mosaic_0001>
module attributes {stable_mosaic.version = 11 : i64} {
  func.func @kernel(%arg0: i32, %arg1: i32, %arg2: memref<8x2x32xf32, #tpu.memory_space<vmem>>, %arg3: memref<8x32xf32, #tpu.memory_space<vmem>>, %arg4: memref<8x2x32xf32, #tpu.memory_space<vmem>>) attributes {dimension_semantics = [#tpu.dimension_semantics<parallel>, #tpu.dimension_semantics<parallel>], iteration_bounds = array<i64: 1, 1>, scalar_prefetch = 0 : i64, scratch_operands = 0 : i64, tpu.core_type = #tpu.core_type<tc>, window_params = [{transform_indices = @transform_0, window_bounds = array<i64: 8, 2, 32>}, {transform_indices = @transform_1, window_bounds = array<i64: 8, 32>}, {transform_indices = @transform_2, window_bounds = array<i64: 8, 2, 32>}]} {
    %c0 = arith.constant 0 : index
    %c0_0 = arith.constant 0 : index
    %c0_1 = arith.constant 0 : index
    %0 = vector.load %arg2[%c0, %c0_0, %c0_1] : memref<8x2x32xf32, #tpu.memory_space<vmem>>, vector<8x2x32xf32>
    %c0_2 = arith.constant 0 : index
    %c0_3 = arith.constant 0 : index
    %1 = vector.load %arg3[%c0_2, %c0_3] : memref<8x32xf32, #tpu.memory_space<vmem>>, vector<8x32xf32>
    %2 = vector.shape_cast %1 : vector<8x32xf32> to vector<8x1x32xf32>
    %3 = vector.broadcast %2 : vector<8x1x32xf32> to vector<8x2x32xf32>
    %4 = arith.addf %0, %3 : vector<8x2x32xf32>
    %c0_4 = arith.constant 0 : index
    %c0_5 = arith.constant 0 : index
    %c0_6 = arith.constant 0 : index
    %5 = vector.load %arg4[%c0_4, %c0_5, %c0_6] : memref<8x2x32xf32, #tpu.memory_space<vmem>>, vector<8x2x32xf32>
    tpu.vector_store %arg4[%c0_4, %c0_5, %c0_6], %4 {strides = array<i32>} : memref<8x2x32xf32, #tpu.memory_space<vmem>>, vector<8x2x32xf32>,
    return
  }
  func.func @transform_0(%arg0: i32, %arg1: i32) -> (i32, i32, i32) {
    %c0_i32 = arith.constant 0 : i32
    %c0_i32_0 = arith.constant 0 : i32
    return %arg0, %c0_i32, %arg1 : i32, i32, i32
  }
  func.func @transform_1(%arg0: i32, %arg1: i32) -> (i32, i32) {
    %c0_i32 = arith.constant 0 : i32
    return %arg0, %arg1 : i32, i32
  }
  func.func @transform_2(%arg0: i32, %arg1: i32) -> (i32, i32, i32) {
    %c0_i32 = arith.constant 0 : i32
    %c0_i32_0 = arith.constant 0 : i32
    return %arg0, %c0_i32, %arg1 : i32, i32, i32
  }
}

</mosaic_0001>

<llo_original>
// kernel: tpu_custom_call.1
$region0: #{tpu_custom_call.1}
  #allocation0 [shape = 'u32[]', space=smem, size = 0x4, offset = 0x4, fixed_abs, tag = 'smem constant byte address 0x4 - core index']
  #allocation1 [shape = 'u32[144,128]{1,0:T(1,128)}', space=vmem, size = 0x12000, scoped, tag = 'internal scratch']
  %s0 = inlined_call_operand.hbm [shape: f32[8,2,32], index: 0, kind: input, shape index: {}]
  %s1 = inlined_call_operand.hbm [shape: f32[16,32], index: 1, kind: input, shape index: {}]
  %s2 = inlined_call_operand.hbm [shape: f32[8,2,32], index: 2, kind: output, shape index: {}]
  %s3 = sld [smem:[#allocation0]]
  $region26: #{tpu_custom_call.1} parent=0
    _
  %s5 = ssub.s32 1, %s3
  %s6 = scalar_select 0, %s5, %s3
  $region1: #{tpu_custom_call.1} parent=0
    #allocation2 [shape = 'u8[8192]{0}', space=vmem, size = 0x2000, scoped, tag = 'input window, operand 0, single buffered']
    #allocation3 [shape = 's32[1]{0}', space=sflag, size = 0x4, scoped, tag = 'scoped memory for tpu_custom_call.1']
    #allocation4 [shape = 's32[1]{0}', space=sflag, size = 0x4, scoped, tag = 'scoped memory for tpu_custom_call.1']
    #allocation5 [shape = 'u8[4096]{0}', space=vmem, size = 0x1000, scoped, tag = 'input window, operand 1, single buffered']
    #allocation6 [shape = 's32[1]{0}', space=sflag, size = 0x4, scoped, tag = 'scoped memory for tpu_custom_call.1']
    #allocation7 [shape = 'u8[8192]{0}', space=vmem, size = 0x2000, scoped, tag = 'output window, operand 0, single buffered']
    %7 = vsyncpa [#allocation3], 0
    %8 = vsyncpa [#allocation6], 0
    %9 = vsyncpa [#allocation4], 0
    // Predicated region
    $region2: #{tpu_custom_call.1} parent=1 // pred_check
      _
    $region3: #{tpu_custom_call.1} parent=1 // pred_check_branch
      %11 = sbr.rel (0) target = $region5
    $region4: #{tpu_custom_call.1} parent=1 // pred_region
      %s13 = ssub.s32 256, 256
      %14 = vsyncadd [#allocation3], %s13
      %s15 = sshll.u32 [#allocation2], 4
      %s16 = int_to_ptr.vmem [resolvable:$true] %s15
      %21 = dma.hbm_to_vmem [thread:$0]  %s0, 256, %s16, [#allocation3], 32, 32, 2
    $region5: #{tpu_custom_call.1} parent=1 // pred_fallthru
      _
    // Predicated region
    $region6: #{tpu_custom_call.1} parent=1 // pred_check
      _
    $region7: #{tpu_custom_call.1} parent=1 // pred_check_branch
      %23 = sbr.rel (0) target = $region9
    $region8: #{tpu_custom_call.1} parent=1 // pred_region
      %s25 = ssub.s32 128, 128
      %26 = vsyncadd [#allocation6], %s25
      %s28 = sshll.u32 [#allocation5], 4
      %s29 = int_to_ptr.vmem [resolvable:$true] %s28
      %31 = dma.hbm_to_vmem [thread:$0]  %s1, 128, %s29, [#allocation6]
    $region9: #{tpu_custom_call.1} parent=1 // pred_fallthru
      _
    // Predicated region
    $region10: #{tpu_custom_call.1} parent=1 // pred_check
      _
    $region11: #{tpu_custom_call.1} parent=1 // pred_check_branch
      %33 = sbr.rel (0) target = $region13
    $region12: #{tpu_custom_call.1} parent=1 // pred_region
      %34 = dma.done [#allocation3], 256
    $region13: #{tpu_custom_call.1} parent=1 // pred_fallthru
      _
    // Predicated region
    $region14: #{tpu_custom_call.1} parent=1 // pred_check
      _
    $region15: #{tpu_custom_call.1} parent=1 // pred_check_branch
      %36 = sbr.rel (0) target = $region17
    $region16: #{tpu_custom_call.1} parent=1 // pred_region
      %37 = dma.done [#allocation6], 128
    $region17: #{tpu_custom_call.1} parent=1 // pred_fallthru
      _
    %v38 = vld [vmem:[#allocation2] sm:$0x3]
    %v39 = vld [vmem:[#allocation2 + $0x2] sm:$0x3]
    %v40 = vld [vmem:[#allocation2 + $0x4] sm:$0x3]
    %v41 = vld [vmem:[#allocation2 + $0x6] sm:$0x3]
    %v42 = vld [vmem:[#allocation2 + $0x8] sm:$0x3]
    %v43 = vld [vmem:[#allocation2 + $0xa] sm:$0x3]
    %v44 = vld [vmem:[#allocation2 + $0xc] sm:$0x3]
    %v45 = vld [vmem:[#allocation2 + $0xe] sm:$0x3]
    %v46 = vld [vmem:[#allocation5] sm:$0xff]
    %v48 = vcombine.high %v46, %v46
    %v50 = vunpack.c.l.s4 1966171168
    %v51 = vunpack.c.0.s8 %v50
    %v52 = vlaneseq
    %v53 = vshrl.u32 %v52, 7
    %v54 = vsub.s32 %v51, %v53
    %v55 = vrot.slane %v46, %v54
    %v57 = vunpack.c.l.s4 1966171168
    %v58 = vunpack.c.0.s8 %v57
    %v59 = vlaneseq
    %v60 = vshrl.u32 %v59, 7
    %v61 = vsub.s32 %v58, %v60
    %v62 = vrot.slane %v48, %v61
    %v63 = vcombine.high %v55, %v55
    %v64 = vcombine.high %v62, %v62
    %v66 = vunpack.c.l.s4 1966171168
    %v67 = vunpack.c.0.s8 %v66
    %v68 = vlaneseq
    %v69 = vshrl.u32 %v68, 7
    %v70 = vsub.s32 %v67, %v69
    %v71 = vrot.slane %v55, %v70
    %v73 = vunpack.c.l.s4 1966171168
    %v74 = vunpack.c.0.s8 %v73
    %v75 = vlaneseq
    %v76 = vshrl.u32 %v75, 7
    %v77 = vsub.s32 %v74, %v76
    %v78 = vrot.slane %v62, %v77
    %v80 = vunpack.c.l.s4 1966171168
    %v81 = vunpack.c.0.s8 %v80
    %v82 = vlaneseq
    %v83 = vshrl.u32 %v82, 7
    %v84 = vsub.s32 %v81, %v83
    %v85 = vrot.slane %v63, %v84
    %v87 = vunpack.c.l.s4 1966171168
    %v88 = vunpack.c.0.s8 %v87
    %v89 = vlaneseq
    %v90 = vshrl.u32 %v89, 7
    %v91 = vsub.s32 %v88, %v90
    %v92 = vrot.slane %v64, %v91
    %v93 = vcombine.high %v71, %v71
    %v94 = vcombine.high %v78, %v78
    %v95 = vcombine.high %v85, %v85
    %v96 = vcombine.high %v92, %v92
    %v97 = vlaneseq
    %v98 = vshrl.u32 %v97, 7
    %v99 = vsub.s32 0, %v98
    %v100 = vrot.slane %v71, %v99
    %v101 = vlaneseq
    %v102 = vshrl.u32 %v101, 7
    %v103 = vsub.s32 0, %v102
    %v104 = vrot.slane %v85, %v103
    %v105 = vlaneseq
    %v106 = vshrl.u32 %v105, 7
    %v107 = vsub.s32 0, %v106
    %v108 = vrot.slane %v93, %v107
    %v109 = vlaneseq
    %v110 = vshrl.u32 %v109, 7
    %v111 = vsub.s32 0, %v110
    %v112 = vrot.slane %v95, %v111
    %v113 = vlaneseq
    %v114 = vshrl.u32 %v113, 7
    %v115 = vsub.s32 0, %v114
    %v116 = vrot.slane %v78, %v115
    %v117 = vlaneseq
    %v118 = vshrl.u32 %v117, 7
    %v119 = vsub.s32 0, %v118
    %v120 = vrot.slane %v92, %v119
    %v121 = vlaneseq
    %v122 = vshrl.u32 %v121, 7
    %v123 = vsub.s32 0, %v122
    %v124 = vrot.slane %v94, %v123
    %v125 = vlaneseq
    %v126 = vshrl.u32 %v125, 7
    %v127 = vsub.s32 0, %v126
    %v128 = vrot.slane %v96, %v127
    %v137 = vadd.f32 %v38, %v100
    %v138 = vadd.f32 %v39, %v104
    %v139 = vadd.f32 %v40, %v108
    %v140 = vadd.f32 %v41, %v112
    %v141 = vadd.f32 %v42, %v116
    %v142 = vadd.f32 %v43, %v120
    %v143 = vadd.f32 %v44, %v124
    %v144 = vadd.f32 %v45, %v128
    %vm145 = vcmask 254976
    %146 = vst.msk [vmem:[#allocation7] sm:$0x3] %vm145, %v137
    %147 = vst.msk [vmem:[#allocation7 + $0x2] sm:$0x3] %vm145, %v138
    %148 = vst.msk [vmem:[#allocation7 + $0x4] sm:$0x3] %vm145, %v139
    %149 = vst.msk [vmem:[#allocation7 + $0x6] sm:$0x3] %vm145, %v140
    %150 = vst.msk [vmem:[#allocation7 + $0x8] sm:$0x3] %vm145, %v141
    %151 = vst.msk [vmem:[#allocation7 + $0xa] sm:$0x3] %vm145, %v142
    %152 = vst.msk [vmem:[#allocation7 + $0xc] sm:$0x3] %vm145, %v143
    %153 = vst.msk [vmem:[#allocation7 + $0xe] sm:$0x3] %vm145, %v144
    // Predicated region
    $region18: #{tpu_custom_call.1} parent=1 // pred_check
      _
    $region19: #{tpu_custom_call.1} parent=1 // pred_check_branch
      %155 = sbr.rel (0) target = $region21
    $region20: #{tpu_custom_call.1} parent=1 // pred_region
      %s157 = ssub.s32 256, 256
      %158 = vsyncadd [#allocation4], %s157
      %s159 = sshll.u32 [#allocation7], 4
      %s160 = int_to_ptr.vmem [resolvable:$true] %s159
      %165 = dma.vmem_to_hbm [thread:$0]  %s160, 256, %s2, [#allocation4], 32, 32, 2
    $region21: #{tpu_custom_call.1} parent=1 // pred_fallthru
      _
    // Predicated region
    $region22: #{tpu_custom_call.1} parent=1 // pred_check
      _
    $region23: #{tpu_custom_call.1} parent=1 // pred_check_branch
      %167 = sbr.rel (0) target = $region25
    $region24: #{tpu_custom_call.1} parent=1 // pred_region
      %168 = dma.done [#allocation4], 256
    $region25: #{tpu_custom_call.1} parent=1 // pred_fallthru
      _
    %169 = vsyncpa [#allocation3], 1
    %170 = vsyncpa [#allocation6], 1
    %171 = vsyncpa [#allocation4], 1

</llo_original>
